<compile_context>
chip_gen: v7x
topology: tpu7x:2x2x1
jax: 0.10.0
libtpu: 0.0.40
codegen_flags: <defaults>
</compile_context>

<pallas_src>
import functools
import math

import jax
import jax.numpy as jnp
from jax.experimental import pallas as pl
from jax.experimental.pallas import tpu as pltpu


def _round_up(x, m):
    return (x + m - 1) // m * m


def _patch_embed_kernel(x_ref, w_ref, b_ref, o_ref, pat_ref, *, C, P, TR, WP):
    """One grid step: TR patch-rows of one image -> (TR*WP, Dp) output tile.

    x_ref:   (1, C, TR, P, WP, P)  raw image tile (free 6-D view of NCHW x)
    w_ref:   (K, Dp)               patch-embedding matrix, K = C*P*P (bf16)
    b_ref:   (1, Dp)               bias (float32)
    o_ref:   (1, TR*WP, Dp)        output tile
    pat_ref: (TR*WP, K)            bf16 VMEM scratch with the relaid-out patches
    """
    PP = P * P
    # Relayout (C, TR, P, WP, P) -> (TR*WP, C*P*P): per (r, c) concatenate the
    # P within-patch rows along lanes and issue ONE lane-dense (WP, P*P) store
    # (for p=16 that is 256 lanes wide), cast to the compute dtype on the way.
    for r in range(TR):
        for c in range(C):
            block = jnp.concatenate(
                [x_ref[0, c, r, i, :, :] for i in range(P)], axis=-1)  # (WP, P*P)
            pat_ref[pl.ds(r * WP, WP), pl.ds(c * PP, PP)] = block.astype(pat_ref.dtype)

    # One big MXU matmul per tile: bf16 operands, f32 accumulation.
    # (Single (TN, K) @ (K, Dp) contraction -- K = C*p*p >= 128 for p >= 8
    # keeps the MXU passes full; do NOT split per-channel.)
    acc = jnp.dot(pat_ref[...], w_ref[...], preferred_element_type=jnp.float32)
    o_ref[0] = (acc + b_ref[...]).astype(o_ref.dtype)


def _pick_row_tile(Hp, Wp, tile_bytes, *, max_rows=512, vmem_budget=20 << 20):
    """Patch-rows per grid step along the N axis.

    Candidates are multiples of the smallest TR that makes TN = TR*Wp a
    multiple of 8 (legal output block), capped at `max_rows` output rows and a
    per-step VMEM byte budget.  Ragged last tiles are allowed (Pallas pads the
    input block and clips the output block), so TR need not divide Hp.
    Preference: minimal padded waste, then >= 2 grid steps along N
    (pipelining / dual-TC sharding), then the largest tile (bigger DMAs,
    fewer per-step overheads).
    """
    t0 = 8 // math.gcd(Wp, 8)
    cands = [tr for tr in range(t0, Hp + 1, t0)
             if tr * Wp <= max_rows and tile_bytes(tr) <= vmem_budget]
    if not cands:
        # t0 <= Hp: TN % 8 == 0 still holds.  t0 > Hp: single tile spanning
        # the full N dim, which is always a legal block.
        return min(t0, Hp)

    def key(tr):
        steps = -(-Hp // tr)
        waste = steps * tr - Hp
        return (waste, 0 if steps >= 2 else 1, -tr)

    return min(cands, key=key)


def make_patch_forward(x, weight, bias, patch_size, dim, *,
                       compute_dtype=jnp.bfloat16, out_dtype=None):
    """Pallas equivalent of MakePatch.forward.

    x:      (B, 3, H, W)  float32, NCHW  (H % patch_size == 0, W % patch_size == 0)
    weight: (dim, 3, patch_size, patch_size)  (PyTorch Conv2d weight layout)
    bias:   (dim,)
    returns (B, (H//p)*(W//p), dim) in out_dtype (defaults to x.dtype).

    Note: patches and weight are downcast to bf16 with f32 accumulation on the
    MXU -- a small precision change vs. the f32 PyTorch conv, fine for ViT.
    """
    B, C, H, W = x.shape
    p = patch_size
    assert H % p == 0 and W % p == 0, "H and W must be multiples of patch_size"
    Hp, Wp = H // p, W // p
    N = Hp * Wp
    K = C * p * p
    out_dtype = x.dtype if out_dtype is None else out_dtype

    # Lane-dense output width only when the padding is cheap (<= 12.5% extra
    # write traffic).  Real ViT dims are multiples of 128 -> no-op there.
    Dp = _round_up(dim, 128)
    if Dp != dim and (Dp - dim) * 8 > dim:
        Dp = dim

    xbytes = x.dtype.itemsize
    obytes = jnp.dtype(out_dtype).itemsize
    cbytes = jnp.dtype(compute_dtype).itemsize

    def tile_bytes(tr):
        tn = tr * Wp
        # 6-D input block: last two dims (Wp, p) are padded to (ceil8(Wp), 128).
        x_tile = C * tr * p * _round_up(Wp, 8) * 128 * xbytes
        o_tile = _round_up(tn, 8) * _round_up(Dp, 128) * obytes
        pat = _round_up(tn, 8) * _round_up(K, 128) * cbytes
        return 2 * x_tile + 2 * o_tile + pat          # in/out double-buffered

    TR = _pick_row_tile(Hp, Wp, tile_bytes)           # patch-rows per grid step
    TN = TR * Wp                                      # output rows per grid step
    n_steps = pl.cdiv(Hp, TR)                         # ragged last tile allowed

    # ---- free metadata reshapes: NO extra HBM pass over the image -----------
    x6 = x.reshape(B, C, Hp, p, Wp, p)

    # Conv weight (dim, C, p, p) -> (K, dim) so patches @ w_mat == conv output;
    # cast once to the MXU compute dtype and pad to the lane-dense width.
    w_mat = weight.reshape(dim, K).T.astype(compute_dtype)
    b_vec = bias.astype(jnp.float32)
    if Dp != dim:
        w_mat = jnp.pad(w_mat, ((0, 0), (0, Dp - dim)))
        b_vec = jnp.pad(b_vec, (0, Dp - dim))
    b_mat = b_vec.reshape(1, Dp)

    # Right-sized scoped-VMEM budget: actual per-step need + resident weight /
    # bias (conservatively double-buffered) + margin; >= 24 MiB, and for all
    # realistic shapes well under v7x's 64 MiB physical VMEM.
    w_res = 2 * _round_up(K, 8) * _round_up(Dp, 128) * cbytes
    b_res = 2 * 8 * _round_up(Dp, 128) * 4
    vmem_limit = int(max(tile_bytes(TR) + w_res + b_res + (2 << 20), 24 << 20))

    kernel = functools.partial(_patch_embed_kernel, C=C, P=p, TR=TR, WP=Wp)

    out = pl.pallas_call(
        kernel,
        out_shape=jax.ShapeDtypeStruct((B, N, Dp), out_dtype),
        grid_spec=pltpu.PrefetchScalarGridSpec(
            num_scalar_prefetch=0,
            grid=(B, n_steps),
            in_specs=[
                # Raw image tile: TR patch-rows of one image (full C, full W).
                pl.BlockSpec((1, C, TR, p, Wp, p),
                             lambda b, n: (b, 0, n, 0, 0, 0)),
                # Weight / bias: constant index_map -> fetched once, resident.
                # (pl.Buffered(1) would shave a second resident copy; skipped
                # here for lowering robustness -- the saving is ~1 MiB.)
                pl.BlockSpec((K, Dp), lambda b, n: (0, 0)),
                pl.BlockSpec((1, Dp), lambda b, n: (0, 0)),
            ],
            out_specs=pl.BlockSpec((1, TN, Dp), lambda b, n: (b, n, 0)),
            scratch_shapes=[pltpu.VMEM((TN, K), compute_dtype)],
        ),
        compiler_params=pltpu.CompilerParams(
            dimension_semantics=("parallel", "parallel"),
            vmem_limit_bytes=vmem_limit,
        ),
    )(x6, w_mat, b_mat)

    if Dp != dim:
        out = out[..., :dim]            # drop lane padding (no-op for ViT dims)
    return out


if __name__ == "__main__":
    patch_size = 4
    dim = 32
    B, C, H, W = 2, 3, 16, 16

    key = jax.random.PRNGKey(0)
    kx, kw, kb = jax.random.split(key, 3)
    x = jax.random.normal(kx, (B, C, H, W), dtype=jnp.float32)
    weight = jax.random.normal(kw, (dim, C, patch_size, patch_size),
                               dtype=jnp.float32) * 0.05
    bias = jax.random.normal(kb, (dim,), dtype=jnp.float32) * 0.05

    y = make_patch_forward(x, weight, bias, patch_size, dim)
    y = jax.block_until_ready(y)

    # Reference: same semantics as nn.Conv2d(3, dim, p, stride=p) -> view -> transpose.
    ref = jax.lax.conv_general_dilated(
        x, weight, window_strides=(patch_size, patch_size), padding="VALID",
        dimension_numbers=("NCHW", "OIHW", "NCHW"))
    ref = ref + bias.reshape(1, dim, 1, 1)
    ref = ref.reshape(B, dim, -1).transpose(0, 2, 1)

    assert y.shape == (B, (H // patch_size) * (W // patch_size), dim)
    # bf16 MXU inputs with f32 accumulation -> loosened tolerance vs f32 conv.
    assert jnp.allclose(y, ref, atol=2e-2, rtol=2e-2)

    print("KERNEL_OK")
</pallas_src>

<mosaic_0001>
module attributes {stable_mosaic.version = 11 : i64} {
  func.func @_patch_embed_kernel(%arg0: i32, %arg1: i32, %arg2: memref<1x3x2x4x4x4xf32, #tpu.memory_space<vmem>>, %arg3: memref<48x32xbf16, #tpu.memory_space<vmem>>, %arg4: memref<1x32xf32, #tpu.memory_space<vmem>>, %arg5: memref<1x8x32xf32, #tpu.memory_space<vmem>>, %arg6: memref<8x48xbf16, #tpu.memory_space<vmem>>) attributes {dimension_semantics = [#tpu.dimension_semantics<parallel>, #tpu.dimension_semantics<parallel>], iteration_bounds = array<i64: 2, 2>, scalar_prefetch = 0 : i64, scratch_operands = 1 : i64, tpu.core_type = #tpu.core_type<tc>, window_params = [{transform_indices = @transform_0, window_bounds = array<i64: 1, 3, 2, 4, 4, 4>}, {pipeline_mode = #tpu.pipeline_mode<synchronous>, transform_indices = @transform_1, window_bounds = array<i64: 48, 32>}, {pipeline_mode = #tpu.pipeline_mode<synchronous>, transform_indices = @transform_2, window_bounds = array<i64: 1, 32>}, {transform_indices = @transform_3, window_bounds = array<i64: 1, 8, 32>}]} {
    %c0 = arith.constant 0 : index
    %c0_0 = arith.constant 0 : index
    %c0_1 = arith.constant 0 : index
    %c0_2 = arith.constant 0 : index
    %c0_3 = arith.constant 0 : index
    %c0_4 = arith.constant 0 : index
    %0 = vector.load %arg2[%c0, %c0_0, %c0_1, %c0_2, %c0_3, %c0_4] : memref<1x3x2x4x4x4xf32, #tpu.memory_space<vmem>>, vector<1x1x1x1x4x4xf32>
    %1 = vector.shape_cast %0 : vector<1x1x1x1x4x4xf32> to vector<4x4xf32>
    %c0_5 = arith.constant 0 : index
    %c0_6 = arith.constant 0 : index
    %c0_7 = arith.constant 0 : index
    %c1 = arith.constant 1 : index
    %c0_8 = arith.constant 0 : index
    %c0_9 = arith.constant 0 : index
    %2 = vector.load %arg2[%c0_5, %c0_6, %c0_7, %c1, %c0_8, %c0_9] : memref<1x3x2x4x4x4xf32, #tpu.memory_space<vmem>>, vector<1x1x1x1x4x4xf32>
    %3 = vector.shape_cast %2 : vector<1x1x1x1x4x4xf32> to vector<4x4xf32>
    %c0_10 = arith.constant 0 : index
    %c0_11 = arith.constant 0 : index
    %c0_12 = arith.constant 0 : index
    %c2 = arith.constant 2 : index
    %c0_13 = arith.constant 0 : index
    %c0_14 = arith.constant 0 : index
    %4 = vector.load %arg2[%c0_10, %c0_11, %c0_12, %c2, %c0_13, %c0_14] : memref<1x3x2x4x4x4xf32, #tpu.memory_space<vmem>>, vector<1x1x1x1x4x4xf32>
    %5 = vector.shape_cast %4 : vector<1x1x1x1x4x4xf32> to vector<4x4xf32>
    %c0_15 = arith.constant 0 : index
    %c0_16 = arith.constant 0 : index
    %c0_17 = arith.constant 0 : index
    %c3 = arith.constant 3 : index
    %c0_18 = arith.constant 0 : index
    %c0_19 = arith.constant 0 : index
    %6 = vector.load %arg2[%c0_15, %c0_16, %c0_17, %c3, %c0_18, %c0_19] : memref<1x3x2x4x4x4xf32, #tpu.memory_space<vmem>>, vector<1x1x1x1x4x4xf32>
    %7 = vector.shape_cast %6 : vector<1x1x1x1x4x4xf32> to vector<4x4xf32>
    %8 = tpu.concatenate %1, %3, %5, %7 in 1 : vector<4x4xf32>, vector<4x4xf32>, vector<4x4xf32>, vector<4x4xf32> -> vector<4x16xf32>
    %9 = arith.truncf %8 : vector<4x16xf32> to vector<4x16xbf16>
    %c0_20 = arith.constant 0 : index
    %c0_21 = arith.constant 0 : index
    %10 = vector.load %arg6[%c0_20, %c0_21] : memref<8x48xbf16, #tpu.memory_space<vmem>>, vector<4x16xbf16>
    tpu.vector_store %arg6[%c0_20, %c0_21], %9 {strides = array<i32>} : memref<8x48xbf16, #tpu.memory_space<vmem>>, vector<4x16xbf16>,
    %c0_22 = arith.constant 0 : index
    %c1_23 = arith.constant 1 : index
    %c0_24 = arith.constant 0 : index
    %c0_25 = arith.constant 0 : index
    %c0_26 = arith.constant 0 : index
    %c0_27 = arith.constant 0 : index
    %11 = vector.load %arg2[%c0_22, %c1_23, %c0_24, %c0_25, %c0_26, %c0_27] : memref<1x3x2x4x4x4xf32, #tpu.memory_space<vmem>>, vector<1x1x1x1x4x4xf32>
    %12 = vector.shape_cast %11 : vector<1x1x1x1x4x4xf32> to vector<4x4xf32>
    %c0_28 = arith.constant 0 : index
    %c1_29 = arith.constant 1 : index
    %c0_30 = arith.constant 0 : index
    %c1_31 = arith.constant 1 : index
    %c0_32 = arith.constant 0 : index
    %c0_33 = arith.constant 0 : index
    %13 = vector.load %arg2[%c0_28, %c1_29, %c0_30, %c1_31, %c0_32, %c0_33] : memref<1x3x2x4x4x4xf32, #tpu.memory_space<vmem>>, vector<1x1x1x1x4x4xf32>
    %14 = vector.shape_cast %13 : vector<1x1x1x1x4x4xf32> to vector<4x4xf32>
    %c0_34 = arith.constant 0 : index
    %c1_35 = arith.constant 1 : index
    %c0_36 = arith.constant 0 : index
    %c2_37 = arith.constant 2 : index
    %c0_38 = arith.constant 0 : index
    %c0_39 = arith.constant 0 : index
    %15 = vector.load %arg2[%c0_34, %c1_35, %c0_36, %c2_37, %c0_38, %c0_39] : memref<1x3x2x4x4x4xf32, #tpu.memory_space<vmem>>, vector<1x1x1x1x4x4xf32>
    %16 = vector.shape_cast %15 : vector<1x1x1x1x4x4xf32> to vector<4x4xf32>
    %c0_40 = arith.constant 0 : index
    %c1_41 = arith.constant 1 : index
    %c0_42 = arith.constant 0 : index
    %c3_43 = arith.constant 3 : index
    %c0_44 = arith.constant 0 : index
    %c0_45 = arith.constant 0 : index
    %17 = vector.load %arg2[%c0_40, %c1_41, %c0_42, %c3_43, %c0_44, %c0_45] : memref<1x3x2x4x4x4xf32, #tpu.memory_space<vmem>>, vector<1x1x1x1x4x4xf32>
    %18 = vector.shape_cast %17 : vector<1x1x1x1x4x4xf32> to vector<4x4xf32>
    %19 = tpu.concatenate %12, %14, %16, %18 in 1 : vector<4x4xf32>, vector<4x4xf32>, vector<4x4xf32>, vector<4x4xf32> -> vector<4x16xf32>
    %20 = arith.truncf %19 : vector<4x16xf32> to vector<4x16xbf16>
    %c0_46 = arith.constant 0 : index
    %c16 = arith.constant 16 : index
    %21 = vector.load %arg6[%c0_46, %c16] : memref<8x48xbf16, #tpu.memory_space<vmem>>, vector<4x16xbf16>
    tpu.vector_store %arg6[%c0_46, %c16], %20 {strides = array<i32>} : memref<8x48xbf16, #tpu.memory_space<vmem>>, vector<4x16xbf16>,
    %c0_47 = arith.constant 0 : index
    %c2_48 = arith.constant 2 : index
    %c0_49 = arith.constant 0 : index
    %c0_50 = arith.constant 0 : index
    %c0_51 = arith.constant 0 : index
    %c0_52 = arith.constant 0 : index
    %22 = vector.load %arg2[%c0_47, %c2_48, %c0_49, %c0_50, %c0_51, %c0_52] : memref<1x3x2x4x4x4xf32, #tpu.memory_space<vmem>>, vector<1x1x1x1x4x4xf32>
    %23 = vector.shape_cast %22 : vector<1x1x1x1x4x4xf32> to vector<4x4xf32>
    %c0_53 = arith.constant 0 : index
    %c2_54 = arith.constant 2 : index
    %c0_55 = arith.constant 0 : index
    %c1_56 = arith.constant 1 : index
    %c0_57 = arith.constant 0 : index
    %c0_58 = arith.constant 0 : index
    %24 = vector.load %arg2[%c0_53, %c2_54, %c0_55, %c1_56, %c0_57, %c0_58] : memref<1x3x2x4x4x4xf32, #tpu.memory_space<vmem>>, vector<1x1x1x1x4x4xf32>
    %25 = vector.shape_cast %24 : vector<1x1x1x1x4x4xf32> to vector<4x4xf32>
    %c0_59 = arith.constant 0 : index
    %c2_60 = arith.constant 2 : index
    %c0_61 = arith.constant 0 : index
    %c2_62 = arith.constant 2 : index
    %c0_63 = arith.constant 0 : index
    %c0_64 = arith.constant 0 : index
    %26 = vector.load %arg2[%c0_59, %c2_60, %c0_61, %c2_62, %c0_63, %c0_64] : memref<1x3x2x4x4x4xf32, #tpu.memory_space<vmem>>, vector<1x1x1x1x4x4xf32>
    %27 = vector.shape_cast %26 : vector<1x1x1x1x4x4xf32> to vector<4x4xf32>
    %c0_65 = arith.constant 0 : index
    %c2_66 = arith.constant 2 : index
    %c0_67 = arith.constant 0 : index
    %c3_68 = arith.constant 3 : index
    %c0_69 = arith.constant 0 : index
    %c0_70 = arith.constant 0 : index
    %28 = vector.load %arg2[%c0_65, %c2_66, %c0_67, %c3_68, %c0_69, %c0_70] : memref<1x3x2x4x4x4xf32, #tpu.memory_space<vmem>>, vector<1x1x1x1x4x4xf32>
    %29 = vector.shape_cast %28 : vector<1x1x1x1x4x4xf32> to vector<4x4xf32>
    %30 = tpu.concatenate %23, %25, %27, %29 in 1 : vector<4x4xf32>, vector<4x4xf32>, vector<4x4xf32>, vector<4x4xf32> -> vector<4x16xf32>
    %31 = arith.truncf %30 : vector<4x16xf32> to vector<4x16xbf16>
    %c0_71 = arith.constant 0 : index
    %c32 = arith.constant 32 : index
    %32 = vector.load %arg6[%c0_71, %c32] : memref<8x48xbf16, #tpu.memory_space<vmem>>, vector<4x16xbf16>
    tpu.vector_store %arg6[%c0_71, %c32], %31 {strides = array<i32>} : memref<8x48xbf16, #tpu.memory_space<vmem>>, vector<4x16xbf16>,
    %c0_72 = arith.constant 0 : index
    %c0_73 = arith.constant 0 : index
    %c1_74 = arith.constant 1 : index
    %c0_75 = arith.constant 0 : index
    %c0_76 = arith.constant 0 : index
    %c0_77 = arith.constant 0 : index
    %33 = vector.load %arg2[%c0_72, %c0_73, %c1_74, %c0_75, %c0_76, %c0_77] : memref<1x3x2x4x4x4xf32, #tpu.memory_space<vmem>>, vector<1x1x1x1x4x4xf32>
    %34 = vector.shape_cast %33 : vector<1x1x1x1x4x4xf32> to vector<4x4xf32>
    %c0_78 = arith.constant 0 : index
    %c0_79 = arith.constant 0 : index
    %c1_80 = arith.constant 1 : index
    %c1_81 = arith.constant 1 : index
    %c0_82 = arith.constant 0 : index
    %c0_83 = arith.constant 0 : index
    %35 = vector.load %arg2[%c0_78, %c0_79, %c1_80, %c1_81, %c0_82, %c0_83] : memref<1x3x2x4x4x4xf32, #tpu.memory_space<vmem>>, vector<1x1x1x1x4x4xf32>
    %36 = vector.shape_cast %35 : vector<1x1x1x1x4x4xf32> to vector<4x4xf32>
    %c0_84 = arith.constant 0 : index
    %c0_85 = arith.constant 0 : index
    %c1_86 = arith.constant 1 : index
    %c2_87 = arith.constant 2 : index
    %c0_88 = arith.constant 0 : index
    %c0_89 = arith.constant 0 : index
    %37 = vector.load %arg2[%c0_84, %c0_85, %c1_86, %c2_87, %c0_88, %c0_89] : memref<1x3x2x4x4x4xf32, #tpu.memory_space<vmem>>, vector<1x1x1x1x4x4xf32>
    %38 = vector.shape_cast %37 : vector<1x1x1x1x4x4xf32> to vector<4x4xf32>
    %c0_90 = arith.constant 0 : index
    %c0_91 = arith.constant 0 : index
    %c1_92 = arith.constant 1 : index
    %c3_93 = arith.constant 3 : index
    %c0_94 = arith.constant 0 : index
    %c0_95 = arith.constant 0 : index
    %39 = vector.load %arg2[%c0_90, %c0_91, %c1_92, %c3_93, %c0_94, %c0_95] : memref<1x3x2x4x4x4xf32, #tpu.memory_space<vmem>>, vector<1x1x1x1x4x4xf32>
    %40 = vector.shape_cast %39 : vector<1x1x1x1x4x4xf32> to vector<4x4xf32>
    %41 = tpu.concatenate %34, %36, %38, %40 in 1 : vector<4x4xf32>, vector<4x4xf32>, vector<4x4xf32>, vector<4x4xf32> -> vector<4x16xf32>
    %42 = arith.truncf %41 : vector<4x16xf32> to vector<4x16xbf16>
    %c4 = arith.constant 4 : index
    %c0_96 = arith.constant 0 : index
    %43 = vector.load %arg6[%c4, %c0_96] : memref<8x48xbf16, #tpu.memory_space<vmem>>, vector<4x16xbf16>
    tpu.vector_store %arg6[%c4, %c0_96], %42 {strides = array<i32>} : memref<8x48xbf16, #tpu.memory_space<vmem>>, vector<4x16xbf16>,
    %c0_97 = arith.constant 0 : index
    %c1_98 = arith.constant 1 : index
    %c1_99 = arith.constant 1 : index
    %c0_100 = arith.constant 0 : index
    %c0_101 = arith.constant 0 : index
    %c0_102 = arith.constant 0 : index
    %44 = vector.load %arg2[%c0_97, %c1_98, %c1_99, %c0_100, %c0_101, %c0_102] : memref<1x3x2x4x4x4xf32, #tpu.memory_space<vmem>>, vector<1x1x1x1x4x4xf32>
    %45 = vector.shape_cast %44 : vector<1x1x1x1x4x4xf32> to vector<4x4xf32>
    %c0_103 = arith.constant 0 : index
    %c1_104 = arith.constant 1 : index
    %c1_105 = arith.constant 1 : index
    %c1_106 = arith.constant 1 : index
    %c0_107 = arith.constant 0 : index
    %c0_108 = arith.constant 0 : index
    %46 = vector.load %arg2[%c0_103, %c1_104, %c1_105, %c1_106, %c0_107, %c0_108] : memref<1x3x2x4x4x4xf32, #tpu.memory_space<vmem>>, vector<1x1x1x1x4x4xf32>
    %47 = vector.shape_cast %46 : vector<1x1x1x1x4x4xf32> to vector<4x4xf32>
    %c0_109 = arith.constant 0 : index
    %c1_110 = arith.constant 1 : index
    %c1_111 = arith.constant 1 : index
    %c2_112 = arith.constant 2 : index
    %c0_113 = arith.constant 0 : index
    %c0_114 = arith.constant 0 : index
    %48 = vector.load %arg2[%c0_109, %c1_110, %c1_111, %c2_112, %c0_113, %c0_114] : memref<1x3x2x4x4x4xf32, #tpu.memory_space<vmem>>, vector<1x1x1x1x4x4xf32>
    %49 = vector.shape_cast %48 : vector<1x1x1x1x4x4xf32> to vector<4x4xf32>
    %c0_115 = arith.constant 0 : index
    %c1_116 = arith.constant 1 : index
    %c1_117 = arith.constant 1 : index
    %c3_118 = arith.constant 3 : index
    %c0_119 = arith.constant 0 : index
    %c0_120 = arith.constant 0 : index
    %50 = vector.load %arg2[%c0_115, %c1_116, %c1_117, %c3_118, %c0_119, %c0_120] : memref<1x3x2x4x4x4xf32, #tpu.memory_space<vmem>>, vector<1x1x1x1x4x4xf32>
    %51 = vector.shape_cast %50 : vector<1x1x1x1x4x4xf32> to vector<4x4xf32>
    %52 = tpu.concatenate %45, %47, %49, %51 in 1 : vector<4x4xf32>, vector<4x4xf32>, vector<4x4xf32>, vector<4x4xf32> -> vector<4x16xf32>
    %53 = arith.truncf %52 : vector<4x16xf32> to vector<4x16xbf16>
    %c4_121 = arith.constant 4 : index
    %c16_122 = arith.constant 16 : index
    %54 = vector.load %arg6[%c4_121, %c16_122] : memref<8x48xbf16, #tpu.memory_space<vmem>>, vector<4x16xbf16>
    tpu.vector_store %arg6[%c4_121, %c16_122], %53 {strides = array<i32>} : memref<8x48xbf16, #tpu.memory_space<vmem>>, vector<4x16xbf16>,
    %c0_123 = arith.constant 0 : index
    %c2_124 = arith.constant 2 : index
    %c1_125 = arith.constant 1 : index
    %c0_126 = arith.constant 0 : index
    %c0_127 = arith.constant 0 : index
    %c0_128 = arith.constant 0 : index
    %55 = vector.load %arg2[%c0_123, %c2_124, %c1_125, %c0_126, %c0_127, %c0_128] : memref<1x3x2x4x4x4xf32, #tpu.memory_space<vmem>>, vector<1x1x1x1x4x4xf32>
    %56 = vector.shape_cast %55 : vector<1x1x1x1x4x4xf32> to vector<4x4xf32>
    %c0_129 = arith.constant 0 : index
    %c2_130 = arith.constant 2 : index
    %c1_131 = arith.constant 1 : index
    %c1_132 = arith.constant 1 : index
    %c0_133 = arith.constant 0 : index
    %c0_134 = arith.constant 0 : index
    %57 = vector.load %arg2[%c0_129, %c2_130, %c1_131, %c1_132, %c0_133, %c0_134] : memref<1x3x2x4x4x4xf32, #tpu.memory_space<vmem>>, vector<1x1x1x1x4x4xf32>
    %58 = vector.shape_cast %57 : vector<1x1x1x1x4x4xf32> to vector<4x4xf32>
    %c0_135 = arith.constant 0 : index
    %c2_136 = arith.constant 2 : index
    %c1_137 = arith.constant 1 : index
    %c2_138 = arith.constant 2 : index
    %c0_139 = arith.constant 0 : index
    %c0_140 = arith.constant 0 : index
    %59 = vector.load %arg2[%c0_135, %c2_136, %c1_137, %c2_138, %c0_139, %c0_140] : memref<1x3x2x4x4x4xf32, #tpu.memory_space<vmem>>, vector<1x1x1x1x4x4xf32>
    %60 = vector.shape_cast %59 : vector<1x1x1x1x4x4xf32> to vector<4x4xf32>
    %c0_141 = arith.constant 0 : index
    %c2_142 = arith.constant 2 : index
    %c1_143 = arith.constant 1 : index
    %c3_144 = arith.constant 3 : index
    %c0_145 = arith.constant 0 : index
    %c0_146 = arith.constant 0 : index
    %61 = vector.load %arg2[%c0_141, %c2_142, %c1_143, %c3_144, %c0_145, %c0_146] : memref<1x3x2x4x4x4xf32, #tpu.memory_space<vmem>>, vector<1x1x1x1x4x4xf32>
    %62 = vector.shape_cast %61 : vector<1x1x1x1x4x4xf32> to vector<4x4xf32>
    %63 = tpu.concatenate %56, %58, %60, %62 in 1 : vector<4x4xf32>, vector<4x4xf32>, vector<4x4xf32>, vector<4x4xf32> -> vector<4x16xf32>
    %64 = arith.truncf %63 : vector<4x16xf32> to vector<4x16xbf16>
    %c4_147 = arith.constant 4 : index
    %c32_148 = arith.constant 32 : index
    %65 = vector.load %arg6[%c4_147, %c32_148] : memref<8x48xbf16, #tpu.memory_space<vmem>>, vector<4x16xbf16>
    tpu.vector_store %arg6[%c4_147, %c32_148], %64 {strides = array<i32>} : memref<8x48xbf16, #tpu.memory_space<vmem>>, vector<4x16xbf16>,
    %c0_149 = arith.constant 0 : index
    %c0_150 = arith.constant 0 : index
    %66 = vector.load %arg6[%c0_149, %c0_150] : memref<8x48xbf16, #tpu.memory_space<vmem>>, vector<8x48xbf16>
    %c0_151 = arith.constant 0 : index
    %c0_152 = arith.constant 0 : index
    %67 = vector.load %arg3[%c0_151, %c0_152] : memref<48x32xbf16, #tpu.memory_space<vmem>>, vector<48x32xbf16>
    %cst = arith.constant dense<0.000000e+00> : vector<8x32xf32>
    %68 = tpu.matmul %66, %67, %cst {dimension_numbers = #tpu.dot_dimension_numbers<[1], [0], [0], [1], [0, 0, 1, 1], [], []>} : vector<8x48xbf16>, vector<48x32xbf16>, vector<8x32xf32> -> vector<8x32xf32>
    %c0_153 = arith.constant 0 : index
    %c0_154 = arith.constant 0 : index
    %69 = vector.load %arg4[%c0_153, %c0_154] : memref<1x32xf32, #tpu.memory_space<vmem>>, vector<1x32xf32>
    %70 = vector.broadcast %69 : vector<1x32xf32> to vector<8x32xf32>
    %71 = arith.addf %68, %70 : vector<8x32xf32>
    %c0_155 = arith.constant 0 : index
    %c0_156 = arith.constant 0 : index
    %c0_157 = arith.constant 0 : index
    %72 = vector.load %arg5[%c0_155, %c0_156, %c0_157] : memref<1x8x32xf32, #tpu.memory_space<vmem>>, vector<1x8x32xf32>
    %73 = vector.shape_cast %72 : vector<1x8x32xf32> to vector<8x32xf32>
    %74 = vector.shape_cast %71 : vector<8x32xf32> to vector<1x8x32xf32>
    tpu.vector_store %arg5[%c0_155, %c0_156, %c0_157], %74 {strides = array<i32>} : memref<1x8x32xf32, #tpu.memory_space<vmem>>, vector<1x8x32xf32>,
    return
  }
  func.func @transform_0(%arg0: i32, %arg1: i32) -> (i32, i32, i32, i32, i32, i32) {
    %c0_i32 = arith.constant 0 : i32
    %c0_i32_0 = arith.constant 0 : i32
    %c0_i32_1 = arith.constant 0 : i32
    %c0_i32_2 = arith.constant 0 : i32
    %c0_i32_3 = arith.constant 0 : i32
    return %arg0, %c0_i32, %arg1, %c0_i32_0, %c0_i32_1, %c0_i32_2 : i32, i32, i32, i32, i32, i32
  }
  func.func @transform_1(%arg0: i32, %arg1: i32) -> (i32, i32) {
    %c0_i32 = arith.constant 0 : i32
    %c0_i32_0 = arith.constant 0 : i32
    %c0_i32_1 = arith.constant 0 : i32
    return %c0_i32, %c0_i32_0 : i32, i32
  }
  func.func @transform_2(%arg0: i32, %arg1: i32) -> (i32, i32) {
    %c0_i32 = arith.constant 0 : i32
    %c0_i32_0 = arith.constant 0 : i32
    %c0_i32_1 = arith.constant 0 : i32
    return %c0_i32, %c0_i32_0 : i32, i32
  }
  func.func @transform_3(%arg0: i32, %arg1: i32) -> (i32, i32, i32) {
    %c0_i32 = arith.constant 0 : i32
    %c0_i32_0 = arith.constant 0 : i32
    return %arg0, %arg1, %c0_i32 : i32, i32, i32
  }
}

</mosaic_0001>

<llo_original>
// kernel: tpu_custom_call.1
$region0: #{tpu_custom_call.1}
  #allocation0 [shape = 'u32[]', space=smem, size = 0x4, offset = 0x4, fixed_abs, tag = 'smem constant byte address 0x4 - core index']
  #allocation1 [shape = 'u32[144,128]{1,0:T(1,128)}', space=vmem, size = 0x12000, scoped, tag = 'internal scratch']
  #allocation2 [shape = 'bf16[8,48]{1,0:T(8,128)(2,1)}', space=vmem, size = 0x800, scoped, tag = 'scratch operand']
  #allocation7 [shape = 's32[]', space=sflag, size = 0x4, offset = 0, fixed_abs, tag = 'sflag constant byte address 0x0 - dummy sync flag']
  %s0 = inlined_call_operand.hbm [shape: f32[2,3,4,4,4,4], index: 0, kind: input, shape index: {}]
  %s1 = inlined_call_operand.vmem [shape: bf16[48,32], index: 1, kind: input, shape index: {}]
  %s2 = inlined_call_operand.vmem [shape: f32[1,32], index: 2, kind: input, shape index: {}]
  %s3 = inlined_call_operand.hbm [shape: f32[2,16,32], index: 3, kind: output, shape index: {}]
  %s4 = sld [smem:[#allocation0]]
  $region49: #{tpu_custom_call.1} parent=0
    _
  %s6 = ssub.s32 1, %s4
  %s7 = scalar_select 0, %s6, %s4
  $region1: #{tpu_custom_call.1} parent=0
    #allocation3 [shape = 'u8[98304]{0}', space=vmem, size = 0x18000, scoped, tag = 'input window, operand 0']
    #allocation4 [shape = 's32[2]{0}', space=sflag, size = 0x8, scoped, tag = 'scoped memory for tpu_custom_call.1']
    #allocation5 [shape = 's32[2]{0}', space=sflag, size = 0x8, scoped, tag = 'scoped memory for tpu_custom_call.1']
    #allocation6 [shape = 'u8[8192]{0}', space=vmem, size = 0x2000, scoped, tag = 'output window, operand 0']
    %8 = vsyncpa [#allocation4], 0
    %s9 = scalar_lea.sflag [#allocation4], 1
    %10 = vsyncpa %s9, 0
    %11 = vsyncpa [#allocation5], 0
    %s12 = scalar_lea.sflag [#allocation5], 1
    %13 = vsyncpa %s12, 0
    loop: start=0, step=1, limit=6
    $region2: #{tpu_custom_call.1} parent=1 // loop_pre_header
      _
    $region3: #{tpu_custom_call.1} parent=1 // loop_header
      %s15 = sphi 0, %s19
      %p16 = scmp.ge.s32.totalorder %s15, 6
      %s22 = sphi 0, %s34
      %s23 = sphi 0, %s30
      %s24 = sphi 0, %s22
      %s25 = sphi 0, %s23
      %s26 = sphi 0, %s24
      %s27 = sphi 0, %s25
      %s39 = sphi 0, %s41
      %s42 = sphi 0, %s39
      %s43 = sphi 0, %s42
      %s59 = sphi 0, %s43
      %s63 = sphi 0, %s63
      %s65 = sphi 0, %s63
      %s66 = sphi 0, %s65
      %s80 = sphi 0, %s66
      %s84 = sphi 0, %s84
      %s86 = sphi 0, %s84
      %s87 = sphi 0, %s86
      %s101 = sphi 0, %s87
      %s109 = sphi 0, %s111
      %s112 = sphi 0, %s109
      %s113 = sphi 0, %s112
      %s129 = sphi 0, %s113
    $region4: #{tpu_custom_call.1} parent=1 // loop_header_branch
      %18 = sbr.rel (%p16) target = $region8
    $region5: #{tpu_custom_call.1} parent=1 // loop_body
      %s20 = ssub.s32 %s15, 1
      %s21 = ssub.s32 %s15, 2
      %s28 = sadd.s32 1, %s23
      %p29 = scmp.ge.s32.totalorder %s28, 2
      %s30 = scalar_select %p29, 0, %s28
      %s31 = sadd.s32 1, %s22
      %s32 = scalar_select %p29, %s31, %s22
      %p33 = scmp.ge.s32.totalorder %s32, 2
      %s34 = scalar_select %p33, 0, %s32
      %s35 = ssub.s32 %s22, %s34
      %s36 = ssub.s32 %s23, %s30
      %s37 = sor.u32 %s35, %s36
      %p38 = scmp.eq.s32.totalorder %s37, 0
      %s40 = sadd.s32 %s39, 1
      %s41 = scalar_select %p38, %s39, %s40
      %p44 = pneg %p38
      %p45 = scmp.eq.s32.totalorder %s15, 3
      %p46 = por %p44, %p45
      %p47 = scmp.ne.s32.totalorder %s39, %s42
      %p48 = scmp.eq.s32.totalorder %s15, 0
      %p49 = por %p47, %p48
      %p50 = scmp.ne.s32.totalorder %s39, %s42
      %p51 = scmp.eq.s32.totalorder %s20, 3
      %p52 = por %p50, %p51
      %p53 = scmp.ne.s32.totalorder %s42, %s43
      %p54 = scmp.eq.s32.totalorder %s20, 0
      %p55 = por %p53, %p54
      %p56 = scmp.ne.s32.totalorder %s42, %s43
      %p57 = scmp.eq.s32.totalorder %s21, 3
      %p58 = por %p56, %p57
      %p60 = scmp.ne.s32.totalorder %s43, %s59
      %p61 = scmp.eq.s32.totalorder %s21, 0
      %p62 = por %p60, %p61
      %s64 = sadd.s32 %s63, 1
      %p67 = scmp.eq.s32.totalorder %s15, 3
      %p68 = scmp.ne.s32.totalorder %s63, %s65
      %p69 = scmp.eq.s32.totalorder %s15, 0
      %p70 = por %p68, %p69
      %p71 = scmp.ne.s32.totalorder %s63, %s65
      %p72 = scmp.eq.s32.totalorder %s20, 3
      %p73 = por %p71, %p72
      %p74 = scmp.ne.s32.totalorder %s65, %s66
      %p75 = scmp.eq.s32.totalorder %s20, 0
      %p76 = por %p74, %p75
      %p77 = scmp.ne.s32.totalorder %s65, %s66
      %p78 = scmp.eq.s32.totalorder %s21, 3
      %p79 = por %p77, %p78
      %p81 = scmp.ne.s32.totalorder %s66, %s80
      %p82 = scmp.eq.s32.totalorder %s21, 0
      %p83 = por %p81, %p82
      %s85 = sadd.s32 %s84, 1
      %p88 = scmp.eq.s32.totalorder %s15, 3
      %p89 = scmp.ne.s32.totalorder %s84, %s86
      %p90 = scmp.eq.s32.totalorder %s15, 0
      %p91 = por %p89, %p90
      %p92 = scmp.ne.s32.totalorder %s84, %s86
      %p93 = scmp.eq.s32.totalorder %s20, 3
      %p94 = por %p92, %p93
      %p95 = scmp.ne.s32.totalorder %s86, %s87
      %p96 = scmp.eq.s32.totalorder %s20, 0
      %p97 = por %p95, %p96
      %p98 = scmp.ne.s32.totalorder %s86, %s87
      %p99 = scmp.eq.s32.totalorder %s21, 3
      %p100 = por %p98, %p99
      %p102 = scmp.ne.s32.totalorder %s87, %s101
      %p103 = scmp.eq.s32.totalorder %s21, 0
      %p104 = por %p102, %p103
      %s105 = ssub.s32 %s22, %s34
      %s106 = ssub.s32 %s23, %s30
      %s107 = sor.u32 %s105, %s106
      %p108 = scmp.eq.s32.totalorder %s107, 0
      %s110 = sadd.s32 %s109, 1
      %s111 = scalar_select %p108, %s109, %s110
      %p114 = pneg %p108
      %p115 = scmp.eq.s32.totalorder %s15, 3
      %p116 = por %p114, %p115
      %p117 = scmp.ne.s32.totalorder %s109, %s112
      %p118 = scmp.eq.s32.totalorder %s15, 0
      %p119 = por %p117, %p118
      %p120 = scmp.ne.s32.totalorder %s109, %s112
      %p121 = scmp.eq.s32.totalorder %s20, 3
      %p122 = por %p120, %p121
      %p123 = scmp.ne.s32.totalorder %s112, %s113
      %p124 = scmp.eq.s32.totalorder %s20, 0
      %p125 = por %p123, %p124
      %p126 = scmp.ne.s32.totalorder %s112, %s113
      %p127 = scmp.eq.s32.totalorder %s21, 3
      %p128 = por %p126, %p127
      %p130 = scmp.ne.s32.totalorder %s113, %s129
      %p131 = scmp.eq.s32.totalorder %s21, 0
      %p132 = por %p130, %p131
      %p133 = scmp.le.s32.totalorder 1, %s15
      %p134 = scmp.lt.s32.totalorder %s15, 5
      %p135 = pnand %p133, %p134
      %p136 = pneg %p135
      // Predicated region
      $region9: #{tpu_custom_call.1} parent=5 // pred_check
        _
      $region10: #{tpu_custom_call.1} parent=5 // pred_check_branch
        %138 = sbr.rel (%p135) target = $region12
      $region11: #{tpu_custom_call.1} parent=5 // pred_region
        %s139 = ssub.s32 %s15, 1
        // Predicated region
        $region13: #{tpu_custom_call.1} parent=11 // pred_check
          %p140 = pneg %p76
        $region14: #{tpu_custom_call.1} parent=11 // pred_check_branch
          %142 = sbr.rel (%p140) target = $region16
        $region15: #{tpu_custom_call.1} parent=11 // pred_region
          _
        $region16: #{tpu_custom_call.1} parent=11 // pred_fallthru
          _
        // Predicated region
        $region17: #{tpu_custom_call.1} parent=11 // pred_check
          %p143 = pneg %p97
        $region18: #{tpu_custom_call.1} parent=11 // pred_check_branch
          %145 = sbr.rel (%p143) target = $region20
        $region19: #{tpu_custom_call.1} parent=11 // pred_region
          _
        $region20: #{tpu_custom_call.1} parent=11 // pred_fallthru
          _
      $region12: #{tpu_custom_call.1} parent=5 // pred_fallthru
        _
      %p146 = scmp.lt.s32.totalorder %s15, 4
      // Predicated region
      $region21: #{tpu_custom_call.1} parent=5 // pred_check
        %p147 = pneg %p146
      $region22: #{tpu_custom_call.1} parent=5 // pred_check_branch
        %149 = sbr.rel (%p147) target = $region24
      $region23: #{tpu_custom_call.1} parent=5 // pred_region
        // Predicated region
        $region25: #{tpu_custom_call.1} parent=23 // pred_check
          %p150 = pneg %p49
        $region26: #{tpu_custom_call.1} parent=23 // pred_check_branch
          %152 = sbr.rel (%p150) target = $region28
        $region27: #{tpu_custom_call.1} parent=23 // pred_region
          #allocation8 [shape = 'u32[6]{0}', space=smem, size = 0x18, scoped, tag = 'DMA stride descriptor']
          %s153 = sand.u32 %s39, 1
          %s154 = scalar_lea.sflag [#allocation4], %s153
          %s155 = sand.u32 %s39, 1
          %s156 = smul.addr %s155, 96
          %s157 = scalar_lea.vmem [#allocation3], %s156
          %s158 = smul.u32 2, %s23
          %s160 = ssub.s32 1536, 1536
          %161 = vsyncadd %s154, %s160
          %s162 = smul.addr %s158, 4
          %s163 = smul.addr %s22, 48
          %s164 = sadd.s32 %s162, %s163
          %s165 = smul.addr %s164, 64
          %s166 = scalar_lea.hbm %s0, %s165
          %s168 = sshll.u32 1, 14
          %s169 = sxor.u32 4294967295, %s168
          %s171 = sld [smem:[#allocation0]]
          %s172 = sadd.s32 2, %s171
          %s174 = sshll.u32 7, 26
          %s175 = sxor.u32 4294967295, %s174
          %s176 = sand.u32 0, %s175
          %s177 = sshll.u32 %s172, 26
          %s178 = sor.u32 %s176, %s177
          %s179 = sshll.u32 %s157, 4
          %s180 = int_to_ptr.vmem [resolvable:$true] %s179
          %186 = sst [smem:[#allocation8]] 1024
          %s187 = scalar_lea.smem [#allocation8], 1
          %188 = sst [smem:[%s187]] 512
          %s189 = scalar_lea.smem [#allocation8], 2
          %190 = sst [smem:[%s189]] 8
          %s191 = scalar_lea.smem [#allocation8], 3
          %192 = sst [smem:[%s191]] 64
          %s193 = scalar_lea.smem [#allocation8], 4
          %194 = sst [smem:[%s193]] 64
          %s195 = scalar_lea.smem [#allocation8], 5
          %196 = sst [smem:[%s195]] 4
          %198 = dma.general %s166, 1536, %s180, %s154, [#allocation7], [#allocation8], %s178, 0
        $region28: #{tpu_custom_call.1} parent=23 // pred_fallthru
          _
      $region24: #{tpu_custom_call.1} parent=5 // pred_fallthru
        _
      %p199 = scmp.le.s32.totalorder 1, %s15
      %p200 = scmp.lt.s32.totalorder %s15, 5
      %p201 = pnand %p199, %p200
      %p202 = pneg %p201
      // Predicated region
      $region29: #{tpu_custom_call.1} parent=5 // pred_check
        _
      $region30: #{tpu_custom_call.1} parent=5 // pred_check_branch
        %204 = sbr.rel (%p201) target = $region32
      $region31: #{tpu_custom_call.1} parent=5 // pred_region
        %s205 = ssub.s32 %s15, 1
        %s206 = sand.u32 %s42, 1
        %s207 = scalar_lea.sflag [#allocation4], %s206
        %s208 = sand.u32 %s42, 1
        %s209 = smul.addr %s208, 96
        %s210 = scalar_lea.vmem [#allocation3], %s209
        // Predicated region
        $region33: #{tpu_custom_call.1} parent=31 // pred_check
          %p211 = pneg %p55
        $region34: #{tpu_custom_call.1} parent=31 // pred_check_branch
          %213 = sbr.rel (%p211) target = $region36
        $region35: #{tpu_custom_call.1} parent=31 // pred_region
          %214 = dma.done %s207, 1536
        $region36: #{tpu_custom_call.1} parent=31 // pred_fallthru
          _
        %s215 = sand.u32 %s42, 1
        %s216 = scalar_lea.sflag [#allocation4], %s215
        %s217 = sand.u32 %s42, 1
        %s218 = smul.addr %s217, 96
        %s219 = scalar_lea.vmem [#allocation3], %s218
        %p220 = pneg %p55
        %p221 = pneg %p52
        %p222 = pneg %p76
        %p223 = pneg %p73
        %p224 = pneg %p97
        %p225 = pneg %p94
        %p226 = pneg %p125
        %p227 = pneg %p122
        %s228 = sand.u32 %s112, 1
        %s229 = scalar_lea.sflag [#allocation5], %s228
        %s230 = sand.u32 %s112, 1
        %s231 = smul.addr %s230, 8
        %s232 = scalar_lea.vmem [#allocation6], %s231
        %s233 = smul.u32 2, %s25
        %v235 = vld [vmem:[%s210] sm:$0xf]
        %s236 = scalar_lea.vmem %s210, 4 [#allocation3]
        %v237 = vld [vmem:[%s236] sm:$0xf]
        %s238 = scalar_lea.vmem %s210, 8 [#allocation3]
        %v239 = vld [vmem:[%s238] sm:$0xf]
        %s240 = scalar_lea.vmem %s210, 12 [#allocation3]
        %v241 = vld [vmem:[%s240] sm:$0xf]
        %243 = vrot.lane.b32.xlu0 %v237, 4
        %v244 = vpop.permute.xlu0 %243
        %247 = vrot.lane.b32.xlu0 %v239, 8
        %v248 = vpop.permute.xlu0 %247
        %251 = vrot.lane.b32.xlu0 %v241, 12
        %v252 = vpop.permute.xlu0 %251
        %vm254 = vcmask 31744
        %v255 = vsel %vm254, %v235, %v244
        %vm256 = vcmask 64512
        %v257 = vsel %vm256, %v255, %v248
        %vm258 = vcmask 97280
        %v259 = vsel %vm258, %v257, %v252
        %v260 = vpack.c.bf16 %v259, %v259
        %vm261 = vcmask 123904
        %262 = vst.msk [vmem:[#allocation2] sm:$0x3] %vm261, %v260
        %s263 = scalar_lea.vmem %s210, 32 [#allocation3]
        %v264 = vld [vmem:[%s263] sm:$0xf]
        %s265 = scalar_lea.vmem %s210, 36 [#allocation3]
        %v266 = vld [vmem:[%s265] sm:$0xf]
        %s267 = scalar_lea.vmem %s210, 40 [#allocation3]
        %v268 = vld [vmem:[%s267] sm:$0xf]
        %s269 = scalar_lea.vmem %s210, 44 [#allocation3]
        %v270 = vld [vmem:[%s269] sm:$0xf]
        %272 = vrot.lane.b32.xlu0 %v266, 4
        %v273 = vpop.permute.xlu0 %272
        %276 = vrot.lane.b32.xlu0 %v268, 8
        %v277 = vpop.permute.xlu0 %276
        %280 = vrot.lane.b32.xlu0 %v270, 12
        %v281 = vpop.permute.xlu0 %280
        %v283 = vsel %vm254, %v264, %v273
        %v284 = vsel %vm256, %v283, %v277
        %v285 = vsel %vm258, %v284, %v281
        %v286 = vpack.c.bf16 %v285, %v285
        %v288 = vunpack.c.l.b16 %v286
        %v289 = vpack.c.b16 %v288, %v288
        %290 = vrot.lane.b32.xlu0 %v289, 16
        %v291 = vpop.permute.xlu0 %290
        %vm293 = vcmask 255104
        %294 = vst.msk [vmem:[#allocation2] sm:$0x3] %vm293, %v291
        %s295 = scalar_lea.vmem %s210, 64 [#allocation3]
        %v296 = vld [vmem:[%s295] sm:$0xf]
        %s297 = scalar_lea.vmem %s210, 68 [#allocation3]
        %v298 = vld [vmem:[%s297] sm:$0xf]
        %s299 = scalar_lea.vmem %s210, 72 [#allocation3]
        %v300 = vld [vmem:[%s299] sm:$0xf]
        %s301 = scalar_lea.vmem %s210, 76 [#allocation3]
        %v302 = vld [vmem:[%s301] sm:$0xf]
        %304 = vrot.lane.b32.xlu0 %v298, 4
        %v305 = vpop.permute.xlu0 %304
        %308 = vrot.lane.b32.xlu0 %v300, 8
        %v309 = vpop.permute.xlu0 %308
        %312 = vrot.lane.b32.xlu0 %v302, 12
        %v313 = vpop.permute.xlu0 %312
        %v315 = vsel %vm254, %v296, %v305
        %v316 = vsel %vm256, %v315, %v309
        %v317 = vsel %vm258, %v316, %v313
        %v318 = vpack.c.bf16 %v317, %v317
        %v320 = vunpack.c.l.b16 %v318
        %v321 = vpack.c.b16 %v320, %v320
        %322 = vrot.lane.b32.xlu0 %v321, 32
        %v323 = vpop.permute.xlu0 %322
        %vm325 = vcmask 386304
        %326 = vst.msk [vmem:[#allocation2] sm:$0x3] %vm325, %v323
        %s327 = scalar_lea.vmem %s210, 16 [#allocation3]
        %v328 = vld [vmem:[%s327] sm:$0xf]
        %s329 = scalar_lea.vmem %s210, 20 [#allocation3]
        %v330 = vld [vmem:[%s329] sm:$0xf]
        %s331 = scalar_lea.vmem %s210, 24 [#allocation3]
        %v332 = vld [vmem:[%s331] sm:$0xf]
        %s333 = scalar_lea.vmem %s210, 28 [#allocation3]
        %v334 = vld [vmem:[%s333] sm:$0xf]
        %336 = vrot.lane.b32.xlu0 %v330, 4
        %v337 = vpop.permute.xlu0 %336
        %340 = vrot.lane.b32.xlu0 %v332, 8
        %v341 = vpop.permute.xlu0 %340
        %344 = vrot.lane.b32.xlu0 %v334, 12
        %v345 = vpop.permute.xlu0 %344
        %v347 = vsel %vm254, %v328, %v337
        %v348 = vsel %vm256, %v347, %v341
        %v349 = vsel %vm258, %v348, %v345
        %v350 = vpack.c.bf16 %v349, %v349
        %v352 = vunpack.c.l.b16 %v350
        %v353 = vpack.c.b16 %v352, %v352
        %v354 = vrot.slane %v353, 6
        %vm356 = vcmask 125954
        %357 = vst.msk [vmem:[#allocation2] sm:$0xc] %vm356, %v354
        %s358 = scalar_lea.vmem %s210, 48 [#allocation3]
        %v359 = vld [vmem:[%s358] sm:$0xf]
        %s360 = scalar_lea.vmem %s210, 52 [#allocation3]
        %v361 = vld [vmem:[%s360] sm:$0xf]
        %s362 = scalar_lea.vmem %s210, 56 [#allocation3]
        %v363 = vld [vmem:[%s362] sm:$0xf]
        %s364 = scalar_lea.vmem %s210, 60 [#allocation3]
        %v365 = vld [vmem:[%s364] sm:$0xf]
        %367 = vrot.lane.b32.xlu0 %v361, 4
        %v368 = vpop.permute.xlu0 %367
        %371 = vrot.lane.b32.xlu0 %v363, 8
        %v372 = vpop.permute.xlu0 %371
        %375 = vrot.lane.b32.xlu0 %v365, 12
        %v376 = vpop.permute.xlu0 %375
        %v378 = vsel %vm254, %v359, %v368
        %v379 = vsel %vm256, %v378, %v372
        %v380 = vsel %vm258, %v379, %v376
        %v381 = vpack.c.bf16 %v380, %v380
        %v383 = vunpack.c.l.b16 %v381
        %v384 = vpack.c.b16 %v383, %v383
        %v385 = vrot.slane %v384, 6
        %386 = vrot.lane.b32.xlu0 %v385, 16
        %v387 = vpop.permute.xlu0 %386
        %vm389 = vcmask 257154
        %390 = vst.msk [vmem:[#allocation2] sm:$0xc] %vm389, %v387
        %s391 = scalar_lea.vmem %s210, 80 [#allocation3]
        %v392 = vld [vmem:[%s391] sm:$0xf]
        %s393 = scalar_lea.vmem %s210, 84 [#allocation3]
        %v394 = vld [vmem:[%s393] sm:$0xf]
        %s395 = scalar_lea.vmem %s210, 88 [#allocation3]
        %v396 = vld [vmem:[%s395] sm:$0xf]
        %s397 = scalar_lea.vmem %s210, 92 [#allocation3]
        %v398 = vld [vmem:[%s397] sm:$0xf]
        %400 = vrot.lane.b32.xlu0 %v394, 4
        %v401 = vpop.permute.xlu0 %400
        %404 = vrot.lane.b32.xlu0 %v396, 8
        %v405 = vpop.permute.xlu0 %404
        %408 = vrot.lane.b32.xlu0 %v398, 12
        %v409 = vpop.permute.xlu0 %408
        %v411 = vsel %vm254, %v392, %v401
        %v412 = vsel %vm256, %v411, %v405
        %v413 = vsel %vm258, %v412, %v409
        %v414 = vpack.c.bf16 %v413, %v413
        %v416 = vunpack.c.l.b16 %v414
        %v417 = vpack.c.b16 %v416, %v416
        %v418 = vrot.slane %v417, 6
        %419 = vrot.lane.b32.xlu0 %v418, 32
        %v420 = vpop.permute.xlu0 %419
        %vm422 = vcmask 388354
        %423 = vst.msk [vmem:[#allocation2] sm:$0xc] %vm422, %v420
        %v424 = vld [vmem:[#allocation2] sm:$0xf]
        %v425 = vld [vmem:[%s1] sm:$0xf]
        %v426 = vld [vmem:[%s1 + $0x4] sm:$0xf]
        %v427 = vld [vmem:[%s1 + $0x8] sm:$0xf]
        %v428 = vld [vmem:[%s1 + $0xc] sm:$0xf]
        %v429 = vld [vmem:[%s1 + $0x10] sm:$0xf]
        %v430 = vld [vmem:[%s1 + $0x14] sm:$0xf]
        %v431 = vld [vmem:[%s2] sm:$0x1]
        %v433 = vlaneseq
        %v434 = vshrl.u32 %v433, 7
        %v435 = vsub.s32 0, %v434
        %v436 = vrot.slane %v431, %v435
        %v444 = vunpack.c.l.b16 %v425
        %v445 = vunpack.c.l.b16 %v426
        %v446 = vunpack.c.l.b16 %v427
        %v447 = vunpack.c.l.b16 %v428
        %v448 = vunpack.c.l.b16 %v429
        %v449 = vunpack.c.l.b16 %v430
        %v450 = vpack.c.b16 %v445, %v444
        %v451 = vpack.c.b16 %v447, %v446
        %v452 = vpack.c.b16 %v449, %v448
        %vm456 = vcmask 392192
        %v458 = vsel %vm456, %v424, 0
        %460 = vmatprep.subr.bf16.mxu0 0
        %461 = vmatpush1.bf16.msra.mxu0 %v450
        %462 = vmatprep.subr.bf16.mxu0 0
        %463 = vmatpush1.bf16.msra.mxu0 %v451
        %464 = vmatprep.subr.bf16.mxu0 0
        %465 = vmatpush1.bf16.msra.mxu0 %v452
        %466 = vmatprep.subr.bf16.mxu0 0
        %467 = vmatpush1.bf16.msra.mxu0 0
        %468 = vmatprep.subr.bf16.mxu0 0
        %469 = vmatpush1.bf16.msra.mxu0 0
        %470 = vmatprep.subr.bf16.mxu0 0
        %471 = vmatpush1.bf16.msra.mxu0 0
        %472 = vmatprep.subr.bf16.mxu0 0
        %473 = vmatpush1.bf16.msra.mxu0 0
        %474 = vmatprep.subr.bf16.mxu0 0
        %475 = vmatpush1.bf16.msra.mxu0 0
        %476 = vmatprep.subr.bf16.mxu0 0
        %477 = vmatpush1.bf16.msra.mxu0 0
        %478 = vmatprep.subr.bf16.mxu0 0
        %479 = vmatpush1.bf16.msra.mxu0 0
        %480 = vmatprep.subr.bf16.mxu0 0
        %481 = vmatpush1.bf16.msra.mxu0 0
        %482 = vmatprep.subr.bf16.mxu0 0
        %483 = vmatpush1.bf16.msra.mxu0 0
        %484 = vmatprep.subr.bf16.mxu0 0
        %485 = vmatpush1.bf16.msra.mxu0 0
        %486 = vmatprep.subr.bf16.mxu0 0
        %487 = vmatpush1.bf16.msra.mxu0 0
        %488 = vmatprep.subr.bf16.mxu0 0
        %489 = vmatpush1.bf16.msra.mxu0 0
        %490 = vmatprep.subr.bf16.mxu0 0
        %491 = vmatpush1.bf16.msra.mxu0 0
        %492 = vmatprep.mubr.bf16.mxu0 0
        %493 = vmatmul.mubr.bf16.gmra.mrb[0].mxu0 %v458
        %v494 = vpop.f32.mrb[0].mxu0
        %v495 = vadd.f32 %v436, %v494
        %v496 = vpop.f32.mrb[0].mxu0
        %v497 = vpop.f32.mrb[0].mxu0
        %v498 = vpop.f32.mrb[0].mxu0
        %499 = vdwg.mxu0
        %vm500 = vcmask 261120
        %501 = vst.msk [vmem:[%s232] sm:$0xff] %vm500, %v495
        %s502 = sand.u32 %s112, 1
        %s503 = scalar_lea.sflag [#allocation5], %s502
        %s504 = sand.u32 %s112, 1
        %s505 = smul.addr %s504, 8
        %s506 = scalar_lea.vmem [#allocation6], %s505
        // Predicated region
        $region37: #{tpu_custom_call.1} parent=31 // pred_check
          %p507 = pneg %p122
        $region38: #{tpu_custom_call.1} parent=31 // pred_check_branch
          %509 = sbr.rel (%p507) target = $region40
        $region39: #{tpu_custom_call.1} parent=31 // pred_region
          %s511 = ssub.s32 128, 128
          %512 = vsyncadd %s503, %s511
          %s513 = smul.addr %s24, 2
          %s514 = sadd.s32 %s25, %s513
          %s515 = smul.addr %s514, 128
          %s516 = scalar_lea.hbm %s3, %s515
          %s518 = sshll.u32 %s506, 4
          %s519 = int_to_ptr.vmem [resolvable:$true] %s518
          %521 = dma.vmem_to_hbm [thread:$0]  %s519, 128, %s516, %s503
        $region40: #{tpu_custom_call.1} parent=31 // pred_fallthru
          _
      $region32: #{tpu_custom_call.1} parent=5 // pred_fallthru
        _
      %p522 = scmp.le.s32.totalorder 2, %s15
      // Predicated region
      $region41: #{tpu_custom_call.1} parent=5 // pred_check
        %p523 = pneg %p522
      $region42: #{tpu_custom_call.1} parent=5 // pred_check_branch
        %525 = sbr.rel (%p523) target = $region44
      $region43: #{tpu_custom_call.1} parent=5 // pred_region
        %s526 = ssub.s32 %s15, 2
        // Predicated region
        $region45: #{tpu_custom_call.1} parent=43 // pred_check
          %p527 = pneg %p128
        $region46: #{tpu_custom_call.1} parent=43 // pred_check_branch
          %529 = sbr.rel (%p527) target = $region48
        $region47: #{tpu_custom_call.1} parent=43 // pred_region
          %s530 = sand.u32 %s113, 1
          %s531 = scalar_lea.sflag [#allocation5], %s530
          %s532 = sand.u32 %s113, 1
          %s533 = smul.addr %s532, 8
          %s534 = scalar_lea.vmem [#allocation6], %s533
          %535 = dma.done %s531, 128
        $region48: #{tpu_custom_call.1} parent=43 // pred_fallthru
          _
      $region44: #{tpu_custom_call.1} parent=5 // pred_fallthru
        _
    $region6: #{tpu_custom_call.1} parent=1 // loop_footer
      %s19 = sadd.s32 1, %s15
    $region7: #{tpu_custom_call.1} parent=1 // loop_footer_branch
      %14 = sbr.rel target = $region3
    $region8: #{tpu_custom_call.1} parent=1 // loop_exit
      _
    %536 = vsyncpa [#allocation4], 1
    %s537 = scalar_lea.sflag [#allocation4], 1
    %538 = vsyncpa %s537, 1
    %539 = vsyncpa [#allocation5], 1
    %s540 = scalar_lea.sflag [#allocation5], 1
    %541 = vsyncpa %s540, 1

</llo_original>
